<compile_context>
chip_gen: v7x
topology: tpu7x:2x2x1
jax: 0.10.0
libtpu: 0.0.40
codegen_flags: <defaults>
</compile_context>

<pallas_src>
import jax
import jax.numpy as jnp
import numpy as np
from jax import lax
from jax.experimental import pallas as pl
from jax.experimental.pallas import tpu as pltpu

EPS = 1e-13


def _cln_kernel(x_ref, g_ref, b_ref, o_ref):
    # x_ref: (Mb, N, TK) block   g_ref / b_ref: (N, 1) full params
    x = x_ref[...].astype(jnp.float32)
    n = x.shape[1]
    inv_n = jnp.float32(1.0 / n)

    # Fused reduction over channels (sublane axis): sum and sum-of-squares.
    s = jnp.sum(x, axis=1, keepdims=True)             # (Mb, 1, TK)
    ss = jnp.sum(x * x, axis=1, keepdims=True)        # (Mb, 1, TK)
    mean = s * inv_n
    var = jnp.maximum(ss * inv_n - mean * mean, 0.0)  # guard tiny negatives
    inv = lax.rsqrt(var + EPS)                        # EUP rsqrt, no divide

    g = g_ref[...][None, :, :]                        # (1, N, 1)
    b = b_ref[...][None, :, :]
    o_ref[...] = (g * ((x - mean) * inv) + b).astype(o_ref.dtype)


def channelwise_layer_norm(y, gamma, beta, *, mb=8, tk_max=512):
    """y: [M, N, K]; gamma, beta: [N] (or [1, N, 1]).  Returns [M, N, K]."""
    M, N, K = y.shape
    gamma = jnp.asarray(gamma, jnp.float32).reshape(N, 1)
    beta = jnp.asarray(beta, jnp.float32).reshape(N, 1)

    # Time tile: pad K up to a multiple of 128, then grow the tile while it
    # still divides the padded length (lane-dense, bigger blocks amortize the
    # per-step overhead) up to tk_max.
    Kp = ((K + 127) // 128) * 128
    tk = 128
    while tk * 2 <= min(tk_max, Kp) and Kp % (tk * 2) == 0:
        tk *= 2

    # Batch tile: fold several batch items into one grid step.
    Mb = min(mb, M)
    Mp = ((M + Mb - 1) // Mb) * Mb

    yp = y
    if (Mp, Kp) != (M, K):
        yp = jnp.pad(y, ((0, Mp - M), (0, 0), (0, Kp - K)))

    grid = (Mp // Mb, Kp // tk)
    out = pl.pallas_call(
        _cln_kernel,
        out_shape=jax.ShapeDtypeStruct((Mp, N, Kp), y.dtype),
        grid=grid,
        in_specs=[
            pl.BlockSpec((Mb, N, tk), lambda m, k: (m, 0, k)),   # y block
            pl.BlockSpec((N, 1), lambda m, k: (0, 0)),           # gamma
            pl.BlockSpec((N, 1), lambda m, k: (0, 0)),           # beta
        ],
        out_specs=pl.BlockSpec((Mb, N, tk), lambda m, k: (m, 0, k)),
        compiler_params=pltpu.CompilerParams(
            dimension_semantics=("parallel", "parallel")),
    )(yp, gamma, beta)

    if (Mp, Kp) != (M, K):
        out = out[:M, :, :K]
    return out


def ref_forward(y, gamma, beta):
    """Pure-JAX reference mirroring the PyTorch module math."""
    N = y.shape[1]
    mean = jnp.mean(y, axis=1, keepdims=True)
    var = jnp.mean((y - mean) ** 2, axis=1, keepdims=True)  # unbiased=False
    g = gamma.reshape(1, N, 1)
    b = beta.reshape(1, N, 1)
    return g * (y - mean) / jnp.sqrt(var + EPS) + b


if __name__ == "__main__":
    key = jax.random.PRNGKey(0)
    k1, k2, k3, k4 = jax.random.split(key, 4)

    # Case 1: lane-aligned shapes (no padding path).
    M, N, K = 2, 16, 256
    y = jax.random.normal(k1, (M, N, K), jnp.float32)
    gamma = 1.0 + 0.1 * jax.random.normal(k2, (N,), jnp.float32)
    beta = 0.1 * jax.random.normal(k3, (N,), jnp.float32)

    out = channelwise_layer_norm(y, gamma, beta)
    out = jax.block_until_ready(out)
    ref = ref_forward(y, gamma, beta)
    assert out.shape == (M, N, K)
    np.testing.assert_allclose(np.asarray(out), np.asarray(ref),
                               rtol=1e-4, atol=1e-5)

    # Case 2: ragged shapes exercising the pad-and-slice path.
    M2, N2, K2 = 3, 8, 200
    y2 = jax.random.normal(k4, (M2, N2, K2), jnp.float32)
    g2 = jnp.ones((N2,), jnp.float32)      # module defaults: gamma=1, beta=0
    b2 = jnp.zeros((N2,), jnp.float32)
    out2 = jax.block_until_ready(channelwise_layer_norm(y2, g2, b2))
    ref2 = ref_forward(y2, g2, b2)
    np.testing.assert_allclose(np.asarray(out2), np.asarray(ref2),
                               rtol=1e-4, atol=1e-5)

    print("KERNEL_OK")
</pallas_src>

<mosaic_0001>
module attributes {stable_mosaic.version = 11 : i64} {
  func.func @_cln_kernel(%arg0: i32, %arg1: i32, %arg2: memref<2x16x256xf32, #tpu.memory_space<vmem>>, %arg3: memref<16x1xf32, #tpu.memory_space<vmem>>, %arg4: memref<16x1xf32, #tpu.memory_space<vmem>>, %arg5: memref<2x16x256xf32, #tpu.memory_space<vmem>>) attributes {dimension_semantics = [#tpu.dimension_semantics<parallel>, #tpu.dimension_semantics<parallel>], iteration_bounds = array<i64: 1, 1>, scalar_prefetch = 0 : i64, scratch_operands = 0 : i64, tpu.core_type = #tpu.core_type<tc>, window_params = [{transform_indices = @transform_0, window_bounds = array<i64: 2, 16, 256>}, {pipeline_mode = #tpu.pipeline_mode<synchronous>, transform_indices = @transform_1, window_bounds = array<i64: 16, 1>}, {pipeline_mode = #tpu.pipeline_mode<synchronous>, transform_indices = @transform_2, window_bounds = array<i64: 16, 1>}, {transform_indices = @transform_3, window_bounds = array<i64: 2, 16, 256>}]} {
    %c0 = arith.constant 0 : index
    %c0_0 = arith.constant 0 : index
    %c0_1 = arith.constant 0 : index
    %0 = vector.load %arg2[%c0, %c0_0, %c0_1] : memref<2x16x256xf32, #tpu.memory_space<vmem>>, vector<2x16x256xf32>
    %cst = arith.constant dense<0.000000e+00> : vector<2x256xf32>
    %1 = vector.multi_reduction <add>, %0, %cst [1] : vector<2x16x256xf32> to vector<2x256xf32>
    %2 = vector.shape_cast %1 : vector<2x256xf32> to vector<2x1x256xf32>
    %3 = arith.mulf %0, %0 : vector<2x16x256xf32>
    %cst_2 = arith.constant dense<0.000000e+00> : vector<2x256xf32>
    %4 = vector.multi_reduction <add>, %3, %cst_2 [1] : vector<2x16x256xf32> to vector<2x256xf32>
    %5 = vector.shape_cast %4 : vector<2x256xf32> to vector<2x1x256xf32>
    %cst_3 = arith.constant 6.250000e-02 : f32
    %6 = vector.broadcast %cst_3 : f32 to vector<2x1x256xf32>
    %7 = arith.mulf %2, %6 : vector<2x1x256xf32>
    %cst_4 = arith.constant 6.250000e-02 : f32
    %8 = vector.broadcast %cst_4 : f32 to vector<2x1x256xf32>
    %9 = arith.mulf %5, %8 : vector<2x1x256xf32>
    %10 = arith.mulf %7, %7 : vector<2x1x256xf32>
    %11 = arith.subf %9, %10 : vector<2x1x256xf32>
    %cst_5 = arith.constant 0.000000e+00 : f32
    %12 = vector.broadcast %cst_5 : f32 to vector<2x1x256xf32>
    %13 = arith.maximumf %11, %12 : vector<2x1x256xf32>
    %cst_6 = arith.constant 9.99999982E-14 : f32
    %14 = vector.broadcast %cst_6 : f32 to vector<2x1x256xf32>
    %15 = arith.addf %13, %14 : vector<2x1x256xf32>
    %16 = math.rsqrt %15 : vector<2x1x256xf32>
    %c0_7 = arith.constant 0 : index
    %c0_8 = arith.constant 0 : index
    %17 = vector.load %arg3[%c0_7, %c0_8] : memref<16x1xf32, #tpu.memory_space<vmem>>, vector<16x1xf32>
    %18 = vector.shape_cast %17 : vector<16x1xf32> to vector<1x16x1xf32>
    %c0_9 = arith.constant 0 : index
    %c0_10 = arith.constant 0 : index
    %19 = vector.load %arg4[%c0_9, %c0_10] : memref<16x1xf32, #tpu.memory_space<vmem>>, vector<16x1xf32>
    %20 = vector.shape_cast %19 : vector<16x1xf32> to vector<1x16x1xf32>
    %21 = vector.broadcast %7 : vector<2x1x256xf32> to vector<2x16x256xf32>
    %22 = arith.subf %0, %21 : vector<2x16x256xf32>
    %23 = vector.broadcast %16 : vector<2x1x256xf32> to vector<2x16x256xf32>
    %24 = arith.mulf %22, %23 : vector<2x16x256xf32>
    %25 = vector.broadcast %18 : vector<1x16x1xf32> to vector<2x16x256xf32>
    %26 = arith.mulf %25, %24 : vector<2x16x256xf32>
    %27 = vector.broadcast %20 : vector<1x16x1xf32> to vector<2x16x256xf32>
    %28 = arith.addf %26, %27 : vector<2x16x256xf32>
    %c0_11 = arith.constant 0 : index
    %c0_12 = arith.constant 0 : index
    %c0_13 = arith.constant 0 : index
    %29 = vector.load %arg5[%c0_11, %c0_12, %c0_13] : memref<2x16x256xf32, #tpu.memory_space<vmem>>, vector<2x16x256xf32>
    tpu.vector_store %arg5[%c0_11, %c0_12, %c0_13], %28 {strides = array<i32>} : memref<2x16x256xf32, #tpu.memory_space<vmem>>, vector<2x16x256xf32>,
    return
  }
  func.func @transform_0(%arg0: i32, %arg1: i32) -> (i32, i32, i32) {
    %c0_i32 = arith.constant 0 : i32
    %c0_i32_0 = arith.constant 0 : i32
    return %arg0, %c0_i32, %arg1 : i32, i32, i32
  }
  func.func @transform_1(%arg0: i32, %arg1: i32) -> (i32, i32) {
    %c0_i32 = arith.constant 0 : i32
    %c0_i32_0 = arith.constant 0 : i32
    %c0_i32_1 = arith.constant 0 : i32
    return %c0_i32, %c0_i32_0 : i32, i32
  }
  func.func @transform_2(%arg0: i32, %arg1: i32) -> (i32, i32) {
    %c0_i32 = arith.constant 0 : i32
    %c0_i32_0 = arith.constant 0 : i32
    %c0_i32_1 = arith.constant 0 : i32
    return %c0_i32, %c0_i32_0 : i32, i32
  }
  func.func @transform_3(%arg0: i32, %arg1: i32) -> (i32, i32, i32) {
    %c0_i32 = arith.constant 0 : i32
    %c0_i32_0 = arith.constant 0 : i32
    return %arg0, %c0_i32, %arg1 : i32, i32, i32
  }
}

</mosaic_0001>

<llo_original>
// kernel: tpu_custom_call.1
$region0: #{tpu_custom_call.1}
  #allocation0 [shape = 'u32[]', space=smem, size = 0x4, offset = 0x4, fixed_abs, tag = 'smem constant byte address 0x4 - core index']
  #allocation1 [shape = 'u32[144,128]{1,0:T(1,128)}', space=vmem, size = 0x12000, scoped, tag = 'internal scratch']
  %s0 = inlined_call_operand.hbm [shape: f32[2,16,256], index: 0, kind: input, shape index: {}]
  %s1 = inlined_call_operand.vmem [shape: f32[16,1], index: 1, kind: input, shape index: {}]
  %s2 = inlined_call_operand.vmem [shape: f32[16,1], index: 2, kind: input, shape index: {}]
  %s3 = inlined_call_operand.hbm [shape: f32[2,16,256], index: 3, kind: output, shape index: {}]
  %s4 = sld [smem:[#allocation0]]
  $region26: #{tpu_custom_call.1} parent=0
    _
  %s6 = ssub.s32 1, %s4
  %s7 = scalar_select 0, %s6, %s4
  $region1: #{tpu_custom_call.1} parent=0
    #allocation2 [shape = 'u8[32768]{0}', space=vmem, size = 0x8000, scoped, tag = 'input window, operand 0, single buffered']
    #allocation3 [shape = 's32[1]{0}', space=sflag, size = 0x4, scoped, tag = 'scoped memory for tpu_custom_call.1']
    #allocation4 [shape = 's32[1]{0}', space=sflag, size = 0x4, scoped, tag = 'scoped memory for tpu_custom_call.1']
    #allocation5 [shape = 'u8[32768]{0}', space=vmem, size = 0x8000, scoped, tag = 'output window, operand 0, single buffered']
    %8 = vsyncpa [#allocation3], 0
    %9 = vsyncpa [#allocation4], 0
    // Predicated region
    $region2: #{tpu_custom_call.1} parent=1 // pred_check
      _
    $region3: #{tpu_custom_call.1} parent=1 // pred_check_branch
      %11 = sbr.rel (0) target = $region5
    $region4: #{tpu_custom_call.1} parent=1 // pred_region
      %s13 = ssub.s32 1024, 1024
      %14 = vsyncadd [#allocation3], %s13
      %s15 = sshll.u32 [#allocation2], 4
      %s16 = int_to_ptr.vmem [resolvable:$true] %s15
      %21 = dma.hbm_to_vmem [thread:$0]  %s0, 1024, %s16, [#allocation3], 256, 256, 16
    $region5: #{tpu_custom_call.1} parent=1 // pred_fallthru
      _
    // Predicated region
    $region6: #{tpu_custom_call.1} parent=1 // pred_check
      _
    $region7: #{tpu_custom_call.1} parent=1 // pred_check_branch
      %23 = sbr.rel (0) target = $region9
    $region8: #{tpu_custom_call.1} parent=1 // pred_region
      _
    $region9: #{tpu_custom_call.1} parent=1 // pred_fallthru
      _
    // Predicated region
    $region10: #{tpu_custom_call.1} parent=1 // pred_check
      _
    $region11: #{tpu_custom_call.1} parent=1 // pred_check_branch
      %25 = sbr.rel (0) target = $region13
    $region12: #{tpu_custom_call.1} parent=1 // pred_region
      _
    $region13: #{tpu_custom_call.1} parent=1 // pred_fallthru
      _
    // Predicated region
    $region14: #{tpu_custom_call.1} parent=1 // pred_check
      _
    $region15: #{tpu_custom_call.1} parent=1 // pred_check_branch
      %27 = sbr.rel (0) target = $region17
    $region16: #{tpu_custom_call.1} parent=1 // pred_region
      %28 = dma.done [#allocation3], 1024
    $region17: #{tpu_custom_call.1} parent=1 // pred_fallthru
      _
    %v29 = vld [vmem:[#allocation2] sm:$0xff]
    %v30 = vld [vmem:[#allocation2 + $0x8] sm:$0xff]
    %v31 = vld [vmem:[#allocation2 + $0x10] sm:$0xff]
    %v32 = vld [vmem:[#allocation2 + $0x18] sm:$0xff]
    %v33 = vld [vmem:[#allocation2 + $0x20] sm:$0xff]
    %v34 = vld [vmem:[#allocation2 + $0x28] sm:$0xff]
    %v35 = vld [vmem:[#allocation2 + $0x30] sm:$0xff]
    %v36 = vld [vmem:[#allocation2 + $0x38] sm:$0xff]
    %v37 = vadd.f32 %v29, %v31
    %v38 = vrot.slane %v37, 4
    %v39 = vadd.f32 %v37, %v38
    %v40 = vrot.slane %v39, 2
    %v41 = vadd.f32 %v39, %v40
    %v42 = vrot.slane %v41, 1
    %v43 = vadd.f32 %v41, %v42
    %v44 = vadd.f32 %v30, %v32
    %v45 = vrot.slane %v44, 4
    %v46 = vadd.f32 %v44, %v45
    %v47 = vrot.slane %v46, 2
    %v48 = vadd.f32 %v46, %v47
    %v49 = vrot.slane %v48, 1
    %v50 = vadd.f32 %v48, %v49
    %v51 = vadd.f32 %v33, %v35
    %v52 = vrot.slane %v51, 4
    %v53 = vadd.f32 %v51, %v52
    %v54 = vrot.slane %v53, 2
    %v55 = vadd.f32 %v53, %v54
    %v56 = vrot.slane %v55, 1
    %v57 = vadd.f32 %v55, %v56
    %v58 = vadd.f32 %v34, %v36
    %v59 = vrot.slane %v58, 4
    %v60 = vadd.f32 %v58, %v59
    %v61 = vrot.slane %v60, 2
    %v62 = vadd.f32 %v60, %v61
    %v63 = vrot.slane %v62, 1
    %v64 = vadd.f32 %v62, %v63
    %v65 = vmul.f32 %v29, %v29
    %v66 = vmul.f32 %v30, %v30
    %v67 = vmul.f32 %v31, %v31
    %v68 = vmul.f32 %v32, %v32
    %v69 = vmul.f32 %v33, %v33
    %v70 = vmul.f32 %v34, %v34
    %v71 = vmul.f32 %v35, %v35
    %v72 = vmul.f32 %v36, %v36
    %v73 = vadd.f32 %v65, %v67
    %v74 = vrot.slane %v73, 4
    %v75 = vadd.f32 %v73, %v74
    %v76 = vrot.slane %v75, 2
    %v77 = vadd.f32 %v75, %v76
    %v78 = vrot.slane %v77, 1
    %v79 = vadd.f32 %v77, %v78
    %v80 = vadd.f32 %v66, %v68
    %v81 = vrot.slane %v80, 4
    %v82 = vadd.f32 %v80, %v81
    %v83 = vrot.slane %v82, 2
    %v84 = vadd.f32 %v82, %v83
    %v85 = vrot.slane %v84, 1
    %v86 = vadd.f32 %v84, %v85
    %v87 = vadd.f32 %v69, %v71
    %v88 = vrot.slane %v87, 4
    %v89 = vadd.f32 %v87, %v88
    %v90 = vrot.slane %v89, 2
    %v91 = vadd.f32 %v89, %v90
    %v92 = vrot.slane %v91, 1
    %v93 = vadd.f32 %v91, %v92
    %v94 = vadd.f32 %v70, %v72
    %v95 = vrot.slane %v94, 4
    %v96 = vadd.f32 %v94, %v95
    %v97 = vrot.slane %v96, 2
    %v98 = vadd.f32 %v96, %v97
    %v99 = vrot.slane %v98, 1
    %v100 = vadd.f32 %v98, %v99
    %v101 = vmul.f32 %v43, 0.0625
    %v102 = vmul.f32 %v50, 0.0625
    %v103 = vmul.f32 %v57, 0.0625
    %v104 = vmul.f32 %v64, 0.0625
    %v105 = vmul.f32 %v79, 0.0625
    %v106 = vmul.f32 %v86, 0.0625
    %v107 = vmul.f32 %v93, 0.0625
    %v108 = vmul.f32 %v100, 0.0625
    %v109 = vmul.f32 %v101, %v101
    %v110 = vmul.f32 %v102, %v102
    %v111 = vmul.f32 %v103, %v103
    %v112 = vmul.f32 %v104, %v104
    %v113 = vsub.f32 %v105, %v109
    %v114 = vsub.f32 %v106, %v110
    %v115 = vsub.f32 %v107, %v111
    %v116 = vsub.f32 %v108, %v112
    %v117 = vmax.f32 %v113, 0.0
    %v118 = vmax.f32 %v114, 0.0
    %v119 = vmax.f32 %v115, 0.0
    %v120 = vmax.f32 %v116, 0.0
    %v121 = vadd.f32 %v117, 1e-13
    %v122 = vadd.f32 %v118, 1e-13
    %v123 = vadd.f32 %v119, 1e-13
    %v124 = vadd.f32 %v120, 1e-13
    %v125 = vrsqrt.pop %v121
    %v126 = vrsqrt.pop %v122
    %v127 = vrsqrt.pop %v123
    %v128 = vrsqrt.pop %v124
    %v129 = vld [vmem:[%s1] sm:$0xff]
    %v130 = vld [vmem:[%s1 + $0x8] sm:$0xff]
    %v131 = vld [vmem:[%s2] sm:$0xff]
    %v132 = vld [vmem:[%s2 + $0x8] sm:$0xff]
    %v133 = vsub.f32 %v29, %v101
    %v134 = vsub.f32 %v30, %v102
    %v135 = vsub.f32 %v31, %v101
    %v136 = vsub.f32 %v32, %v102
    %v137 = vsub.f32 %v33, %v103
    %v138 = vsub.f32 %v34, %v104
    %v139 = vsub.f32 %v35, %v103
    %v140 = vsub.f32 %v36, %v104
    %v141 = vmul.f32 %v133, %v125
    %v142 = vmul.f32 %v134, %v126
    %v143 = vmul.f32 %v135, %v125
    %v144 = vmul.f32 %v136, %v126
    %v145 = vmul.f32 %v137, %v127
    %v146 = vmul.f32 %v138, %v128
    %v147 = vmul.f32 %v139, %v127
    %v148 = vmul.f32 %v140, %v128
    %150 = vset.pattern.permute.xlu0 0
    %151 = vperm.xlu0 %150, %v129
    %v152 = vpop.permute.xlu0 %151
    %155 = vset.pattern.permute.xlu0 0
    %156 = vperm.xlu0 %155, %v130
    %v157 = vpop.permute.xlu0 %156
    %v159 = vmul.f32 %v152, %v141
    %v160 = vmul.f32 %v152, %v142
    %v161 = vmul.f32 %v157, %v143
    %v162 = vmul.f32 %v157, %v144
    %v163 = vmul.f32 %v152, %v145
    %v164 = vmul.f32 %v152, %v146
    %v165 = vmul.f32 %v157, %v147
    %v166 = vmul.f32 %v157, %v148
    %168 = vset.pattern.permute.xlu0 0
    %169 = vperm.xlu0 %168, %v131
    %v170 = vpop.permute.xlu0 %169
    %173 = vset.pattern.permute.xlu0 0
    %174 = vperm.xlu0 %173, %v132
    %v175 = vpop.permute.xlu0 %174
    %v177 = vadd.f32 %v159, %v170
    %v178 = vadd.f32 %v160, %v170
    %v179 = vadd.f32 %v161, %v175
    %v180 = vadd.f32 %v162, %v175
    %v181 = vadd.f32 %v163, %v170
    %v182 = vadd.f32 %v164, %v170
    %v183 = vadd.f32 %v165, %v175
    %v184 = vadd.f32 %v166, %v175
    %185 = vst [vmem:[#allocation5] sm:$0xff] %v177
    %186 = vst [vmem:[#allocation5 + $0x8] sm:$0xff] %v178
    %187 = vst [vmem:[#allocation5 + $0x10] sm:$0xff] %v179
    %188 = vst [vmem:[#allocation5 + $0x18] sm:$0xff] %v180
    %189 = vst [vmem:[#allocation5 + $0x20] sm:$0xff] %v181
    %190 = vst [vmem:[#allocation5 + $0x28] sm:$0xff] %v182
    %191 = vst [vmem:[#allocation5 + $0x30] sm:$0xff] %v183
    %192 = vst [vmem:[#allocation5 + $0x38] sm:$0xff] %v184
    // Predicated region
    $region18: #{tpu_custom_call.1} parent=1 // pred_check
      _
    $region19: #{tpu_custom_call.1} parent=1 // pred_check_branch
      %194 = sbr.rel (0) target = $region21
    $region20: #{tpu_custom_call.1} parent=1 // pred_region
      %s196 = ssub.s32 1024, 1024
      %197 = vsyncadd [#allocation4], %s196
      %s198 = sshll.u32 [#allocation5], 4
      %s199 = int_to_ptr.vmem [resolvable:$true] %s198
      %204 = dma.vmem_to_hbm [thread:$0]  %s199, 1024, %s3, [#allocation4], 256, 256, 16
    $region21: #{tpu_custom_call.1} parent=1 // pred_fallthru
      _
    // Predicated region
    $region22: #{tpu_custom_call.1} parent=1 // pred_check
      _
    $region23: #{tpu_custom_call.1} parent=1 // pred_check_branch
      %206 = sbr.rel (0) target = $region25
    $region24: #{tpu_custom_call.1} parent=1 // pred_region
      %207 = dma.done [#allocation4], 1024
    $region25: #{tpu_custom_call.1} parent=1 // pred_fallthru
      _
    %208 = vsyncpa [#allocation3], 1
    %209 = vsyncpa [#allocation4], 1

</llo_original>
